<compile_context>
chip_gen: v7x
topology: tpu7x:2x2x1
jax: 0.10.0
libtpu: 0.0.40
codegen_flags: <defaults>
</compile_context>

<pallas_src>
import math

import jax
import jax.numpy as jnp
from jax.experimental import pallas as pl
from jax.experimental.pallas import tpu as pltpu


_LANE = 128


# ----------------------------------------------------------------------------
# VMEM / tiling helpers (generation-aware)
# ----------------------------------------------------------------------------
def _usable_vmem_bytes():
    """~87% of this generation's physical VMEM (fallback: v7x's 64 MiB/TC)."""
    try:
        cap = int(pltpu.get_tpu_info().vmem_capacity_bytes)
    except Exception:
        cap = 64 * 1024 * 1024
    return (cap * 7) // 8


def _pick_adj_row_strip(n, itemsize, budget_bytes):
    """Row-strip height TN for a (TN, N) adj block under budget_bytes.

    Prefers TN == N (whole adjacency resident per batch -> DMA'd once and
    reused across all k diffusion steps).  Otherwise the largest multiple-of-8
    divisor of N that fits; if none fits, the smallest multiple-of-8 divisor
    (minimise VMEM); if N has no such divisor, fall back to N.
    """
    if n * n * itemsize <= budget_bytes:
        return n
    best_fit = None
    smallest = None
    for t in range(8, n, 8):
        if n % t == 0:
            if smallest is None:
                smallest = t
            if t * n * itemsize <= budget_bytes:
                best_fit = t
    if best_fit is not None:
        return best_fit
    if smallest is not None:
        return smallest
    # TODO(synk): pad N to a multiple of 8 for awkward N instead of whole-row fallback.
    return n


# ----------------------------------------------------------------------------
# Fused kernel: out = x@W + sum_{i=1..k} A^i @ (x@W) + bias, via s <- A @ s
# ----------------------------------------------------------------------------
def _diffusion_kernel(x_ref, w_ref, adj_ref, bias_ref, o_ref, s_buf, acc_ref):
    """Grid step (batch b [squeezed], diffusion step j, adj row strip r).

    x_ref   : (N, Fin)   compute dtype, resident per batch
    w_ref   : (Fin, Fp)  compute dtype, resident
    adj_ref : (TN, N)    compute dtype row strip
    bias_ref: (1, Fp)    f32
    o_ref   : (N, Fp)    output, resident per batch (constant block over j, r)
    s_buf   : (2, N, Fp) compute-dtype scratch: diffusion state (ping-pong)
    acc_ref : (N, Fp)    f32 scratch: output accumulator
    """
    j = pl.program_id(1)
    r = pl.program_id(2)
    k_last = pl.num_programs(1) - 1
    tn = adj_ref.shape[0]

    # Seed once per batch: support = x @ W seeds the state and the accumulator.
    @pl.when((j == 0) & (r == 0))
    def _seed():
        support = jnp.dot(x_ref[...], w_ref[...],
                          preferred_element_type=jnp.float32)
        acc_ref[...] = support
        s_buf[0] = support.astype(s_buf.dtype)

    # Ping-pong between the two state buffers based on the parity of j
    # (single codegen path, dynamic leading-axis index).
    src = jax.lax.rem(j, 2)
    dst = 1 - src
    rows = pl.ds(pl.multiple_of(r * tn, tn), tn)

    # Strip of A @ s_j for rows [r*tn, r*tn + tn), f32 accumulation on the MXU.
    strip = jnp.dot(adj_ref[...], s_buf[src], preferred_element_type=jnp.float32)
    s_buf[dst, rows, :] = strip.astype(s_buf.dtype)   # s_{j+1} rows
    acc_ref[rows, :] = acc_ref[rows, :] + strip       # out += A^{j+1} @ support

    @pl.when(j == k_last)
    def _finalize():
        o_ref[rows, :] = (acc_ref[rows, :] + bias_ref[...]).astype(o_ref.dtype)


def _diffuse(x_c, adj_c, w_c, bias_2d, k, out_dtype, usable_vmem, fixed_bytes,
             adj_buffer_count):
    B, N, Fin = x_c.shape
    Fp = w_c.shape[1]
    cdt = adj_c.dtype
    csize = jnp.dtype(cdt).itemsize
    osize = jnp.dtype(out_dtype).itemsize

    nbuf = max(2, int(adj_buffer_count))
    adj_budget = max((usable_vmem - fixed_bytes) // nbuf, 1 << 20)
    tn = _pick_adj_row_strip(N, csize, adj_budget)
    num_strips = max(N // tn, 1)

    vmem_needed = fixed_bytes + nbuf * tn * N * csize
    vmem_limit = int(min(usable_vmem, max(vmem_needed + (4 << 20), 16 << 20)))

    adj_spec_kwargs = {}
    if num_strips > 1 and nbuf != 2:
        # Deeper adj-strip pipelining (mainly useful on v7x strip mode).
        adj_spec_kwargs["pipeline_mode"] = pl.Buffered(nbuf)

    # adj is re-streamed k times per batch only in strip mode; once if resident.
    adj_bytes = B * N * N * csize * (k if num_strips > 1 else 1)
    cost = pl.CostEstimate(
        flops=2 * B * N * Fin * Fp + 2 * B * k * N * N * Fp,
        transcendentals=0,
        bytes_accessed=int(adj_bytes + B * N * Fin * csize
                           + Fin * Fp * csize + B * N * Fp * osize),
    )

    # NOTE: batch axis is 'parallel' -- on v7x (2 TCs) both cores are only
    # filled when B >= 2; for B == 1 consider batching several graphs per call.
    return pl.pallas_call(
        _diffusion_kernel,
        out_shape=jax.ShapeDtypeStruct((B, N, Fp), out_dtype),
        grid_spec=pltpu.PrefetchScalarGridSpec(
            num_scalar_prefetch=0,
            grid=(B, k, num_strips),
            in_specs=[
                pl.BlockSpec((None, N, Fin), lambda b, j, r: (b, 0, 0)),   # x
                pl.BlockSpec((Fin, Fp), lambda b, j, r: (0, 0)),           # weight
                pl.BlockSpec((None, tn, N), lambda b, j, r: (b, r, 0),     # adj strip
                             **adj_spec_kwargs),
                pl.BlockSpec((1, Fp), lambda b, j, r: (0, 0)),             # bias
            ],
            out_specs=pl.BlockSpec((None, N, Fp), lambda b, j, r: (b, 0, 0)),
            scratch_shapes=[
                pltpu.VMEM((2, N, Fp), cdt),        # diffusion state (ping-pong)
                pltpu.VMEM((N, Fp), jnp.float32),   # f32 output accumulator
            ],
        ),
        compiler_params=pltpu.CompilerParams(
            dimension_semantics=("parallel", "arbitrary", "arbitrary"),
            vmem_limit_bytes=vmem_limit,
        ),
        cost_estimate=cost,
    )(x_c, w_c, adj_c, bias_2d)


# ----------------------------------------------------------------------------
# k == 0 path: out = x @ W + bias (row-tiled fused matmul over B*N rows)
# ----------------------------------------------------------------------------
def _support_bias_kernel(x_ref, w_ref, bias_ref, o_ref):
    o_ref[...] = (
        jnp.dot(x_ref[...], w_ref[...], preferred_element_type=jnp.float32)
        + bias_ref[...]
    ).astype(o_ref.dtype)


def _support_bias(x_c, w_c, bias_2d, B, N, out_dtype, tm=512):
    M = B * N
    Fin = x_c.shape[-1]
    Fp = w_c.shape[1]
    x2d = x_c.reshape(M, Fin)
    tm = min(tm, M)                 # fixed 512-row tiles; ragged tail handled
    grid = (pl.cdiv(M, tm),)        # by Pallas block padding / masked writes
    out = pl.pallas_call(
        _support_bias_kernel,
        out_shape=jax.ShapeDtypeStruct((M, Fp), out_dtype),
        grid_spec=pltpu.PrefetchScalarGridSpec(
            num_scalar_prefetch=0,
            grid=grid,
            in_specs=[
                pl.BlockSpec((tm, Fin), lambda i: (i, 0)),
                pl.BlockSpec((Fin, Fp), lambda i: (0, 0)),
                pl.BlockSpec((1, Fp), lambda i: (0, 0)),
            ],
            out_specs=pl.BlockSpec((tm, Fp), lambda i: (i, 0)),
        ),
        compiler_params=pltpu.CompilerParams(
            dimension_semantics=("parallel",),
        ),
        cost_estimate=pl.CostEstimate(
            flops=2 * M * Fin * Fp,
            transcendentals=0,
            bytes_accessed=int(M * Fin * x2d.dtype.itemsize
                               + Fin * Fp * x2d.dtype.itemsize
                               + M * Fp * jnp.dtype(out_dtype).itemsize),
        ),
    )(x2d, w_c, bias_2d)
    return out.reshape(B, N, Fp)


# ----------------------------------------------------------------------------
# Wrapper
# ----------------------------------------------------------------------------
def graph_diffusion_convolution(x, adj, weight, bias, k=2, *,
                                compute_dtype=None,
                                adj_buffer_count=2):
    """x: (B,N,Fin), adj: (B,N,N), weight: (Fin,Fout), bias: (Fout,)|None.

    compute_dtype=None -> float32 (exact PyTorch semantics).  Pass
    jnp.bfloat16 as an explicit opt-in to halve HBM traffic on this
    memory-bound kernel (MXU accumulation stays f32 either way).
    """
    B, N, Fin = x.shape
    Fout = weight.shape[1]
    out_dtype = x.dtype
    cdt = jnp.float32 if compute_dtype is None else jnp.dtype(compute_dtype)
    csize = jnp.dtype(cdt).itemsize
    osize = jnp.dtype(out_dtype).itemsize

    usable_vmem = _usable_vmem_bytes()

    # Per-batch fixed VMEM buffers (everything except the adj strip buffers).
    def _fixed_bytes(fp):
        return (2 * N * Fin * csize       # x block (double buffered)
                + 2 * Fin * fp * csize    # weight (double buffered)
                + 2 * fp * 4              # bias
                + 2 * N * fp * osize      # output block (double buffered)
                + 2 * N * fp * csize      # diffusion-state ping-pong scratch
                + N * fp * 4)             # f32 accumulator scratch

    # Pad the output lane dim to 128 (lane-dense vst instead of masked stores)
    # when it is small and at least half the usable VMEM stays free for adj.
    Fp = Fout
    if Fout < _LANE and _fixed_bytes(_LANE) <= usable_vmem // 2:
        Fp = _LANE

    x_c = x.astype(cdt)
    w_c = weight.astype(cdt)
    if Fp != Fout:
        w_c = jnp.pad(w_c, ((0, 0), (0, Fp - Fout)))
    if bias is None:
        bias_2d = jnp.zeros((1, Fp), jnp.float32)
    else:
        bias_2d = jnp.zeros((1, Fp), jnp.float32).at[0, :Fout].set(
            jnp.asarray(bias).astype(jnp.float32))

    if k == 0:
        out = _support_bias(x_c, w_c, bias_2d, B, N, out_dtype)
    else:
        out = _diffuse(x_c, adj.astype(cdt), w_c, bias_2d, k, out_dtype,
                       usable_vmem, _fixed_bytes(Fp), adj_buffer_count)

    if Fp != Fout:
        out = out[:, :, :Fout]
    # torch's .squeeze(dim=2): only drops the axis if it has size 1.
    if out.shape[2] == 1:
        out = jnp.squeeze(out, axis=2)
    return out


# ----------------------------------------------------------------------------
# Pure-JAX reference (mirrors the PyTorch forward with explicit A^i powers)
# ----------------------------------------------------------------------------
def reference_jax(x, adj, weight, bias, k=2):
    hp = jax.lax.Precision.HIGHEST
    support = jnp.einsum("bnf,fo->bno", x, weight, precision=hp)
    out = support
    adj_k = adj
    for _ in range(k):
        out = out + jnp.einsum("bnm,bmo->bno", adj_k, support, precision=hp)
        adj_k = jnp.einsum("bnm,bmp->bnp", adj_k, adj, precision=hp)
    if bias is not None:
        out = out + bias
    if out.shape[2] == 1:
        out = jnp.squeeze(out, axis=2)
    return out


if __name__ == "__main__":
    B, N, Fin, Fout, K = 2, 16, 8, 4, 2

    key = jax.random.PRNGKey(0)
    kx, kadj, kw, kb = jax.random.split(key, 4)

    # Deterministic parameter init mirroring reset_parameters():
    # uniform(-stdv, stdv) with stdv = 1 / sqrt(in_features * k)
    stdv = 1.0 / math.sqrt(Fin * K)
    weight = jax.random.uniform(kw, (Fin, Fout), jnp.float32, -stdv, stdv)
    bias = jax.random.uniform(kb, (Fout,), jnp.float32, -stdv, stdv)

    x = jax.random.normal(kx, (B, N, Fin), jnp.float32)
    adj = jax.random.normal(kadj, (B, N, N), jnp.float32) * 0.1

    ref = reference_jax(x, adj, weight, bias, k=K)

    # Default (exact) path: f32 compute -> must match the reference tightly.
    out_f32 = jax.block_until_ready(
        graph_diffusion_convolution(x, adj, weight, bias, k=K))
    assert out_f32.shape == ref.shape, (out_f32.shape, ref.shape)
    assert jnp.allclose(out_f32, ref, atol=1e-4, rtol=1e-4), "f32 path mismatch"

    # Fast path: bf16 compute (half the HBM bytes), f32 accumulation.
    out_bf16 = jax.block_until_ready(
        graph_diffusion_convolution(x, adj, weight, bias, k=K,
                                    compute_dtype=jnp.bfloat16))
    assert out_bf16.shape == ref.shape, (out_bf16.shape, ref.shape)
    assert jnp.allclose(out_bf16, ref, atol=3e-2, rtol=3e-2), "bf16 path mismatch"

    # Fout == 1 exercises torch's .squeeze(dim=2) behaviour.
    w1 = jax.random.uniform(kw, (Fin, 1), jnp.float32, -stdv, stdv)
    b1 = jax.random.uniform(kb, (1,), jnp.float32, -stdv, stdv)
    ref1 = reference_jax(x, adj, w1, b1, k=K)
    out1 = jax.block_until_ready(
        graph_diffusion_convolution(x, adj, w1, b1, k=K))
    assert out1.shape == ref1.shape == (B, N), (out1.shape, ref1.shape)
    assert jnp.allclose(out1, ref1, atol=1e-4, rtol=1e-4), "Fout=1 path mismatch"

    # k == 0 (support + bias only) path.
    ref0 = reference_jax(x, adj, weight, bias, k=0)
    out0 = jax.block_until_ready(
        graph_diffusion_convolution(x, adj, weight, bias, k=0))
    assert out0.shape == ref0.shape, (out0.shape, ref0.shape)
    assert jnp.allclose(out0, ref0, atol=1e-4, rtol=1e-4), "k=0 path mismatch"

    print("KERNEL_OK")
</pallas_src>

<mosaic_0001>
module attributes {stable_mosaic.version = 11 : i64} {
  func.func @_diffusion_kernel(%arg0: i32, %arg1: i32, %arg2: i32, %arg3: memref<1x16x8xf32, #tpu.memory_space<vmem>>, %arg4: memref<8x128xf32, #tpu.memory_space<vmem>>, %arg5: memref<1x16x16xf32, #tpu.memory_space<vmem>>, %arg6: memref<1x128xf32, #tpu.memory_space<vmem>>, %arg7: memref<1x16x128xf32, #tpu.memory_space<vmem>>, %arg8: memref<2x16x128xf32, #tpu.memory_space<vmem>>, %arg9: memref<16x128xf32, #tpu.memory_space<vmem>>) attributes {dimension_semantics = [#tpu.dimension_semantics<parallel>, #tpu.dimension_semantics<arbitrary>, #tpu.dimension_semantics<arbitrary>], iteration_bounds = array<i64: 2, 2, 1>, scalar_prefetch = 0 : i64, scratch_operands = 2 : i64, tpu.core_type = #tpu.core_type<tc>, window_params = [{transform_indices = @transform_0, window_bounds = array<i64: 1, 16, 8>}, {pipeline_mode = #tpu.pipeline_mode<synchronous>, transform_indices = @transform_1, window_bounds = array<i64: 8, 128>}, {transform_indices = @transform_2, window_bounds = array<i64: 1, 16, 16>}, {pipeline_mode = #tpu.pipeline_mode<synchronous>, transform_indices = @transform_3, window_bounds = array<i64: 1, 128>}, {transform_indices = @transform_4, window_bounds = array<i64: 1, 16, 128>}]} {
    %c0_i32 = arith.constant 0 : i32
    %0 = arith.cmpi eq, %arg1, %c0_i32 : i32
    %c0_i32_0 = arith.constant 0 : i32
    %1 = arith.cmpi eq, %arg2, %c0_i32_0 : i32
    %2 = arith.andi %0, %1 : i1
    %3 = arith.extui %2 : i1 to i32
    %c0_i32_1 = arith.constant 0 : i32
    %4 = arith.cmpi ne, %3, %c0_i32_1 : i32
    scf.if %4 {
      %c0_11 = arith.constant 0 : index
      %c0_12 = arith.constant 0 : index
      %c0_13 = arith.constant 0 : index
      %28 = vector.load %arg3[%c0_11, %c0_12, %c0_13] : memref<1x16x8xf32, #tpu.memory_space<vmem>>, vector<1x16x8xf32>
      %29 = vector.shape_cast %28 : vector<1x16x8xf32> to vector<16x8xf32>
      %c0_14 = arith.constant 0 : index
      %c0_15 = arith.constant 0 : index
      %30 = vector.load %arg4[%c0_14, %c0_15] : memref<8x128xf32, #tpu.memory_space<vmem>>, vector<8x128xf32>
      %cst_16 = arith.constant dense<0.000000e+00> : vector<16x128xf32>
      %31 = tpu.matmul %29, %30, %cst_16 {dimension_numbers = #tpu.dot_dimension_numbers<[1], [0], [0], [1], [0, 0, 1, 1], [], []>} : vector<16x8xf32>, vector<8x128xf32>, vector<16x128xf32> -> vector<16x128xf32>
      %c0_17 = arith.constant 0 : index
      %c0_18 = arith.constant 0 : index
      %32 = vector.load %arg9[%c0_17, %c0_18] : memref<16x128xf32, #tpu.memory_space<vmem>>, vector<16x128xf32>
      tpu.vector_store %arg9[%c0_17, %c0_18], %31 {strides = array<i32>} : memref<16x128xf32, #tpu.memory_space<vmem>>, vector<16x128xf32>,
      %c0_19 = arith.constant 0 : index
      %c0_20 = arith.constant 0 : index
      %c0_21 = arith.constant 0 : index
      %33 = vector.load %arg8[%c0_19, %c0_20, %c0_21] : memref<2x16x128xf32, #tpu.memory_space<vmem>>, vector<1x16x128xf32>
      %34 = vector.shape_cast %33 : vector<1x16x128xf32> to vector<16x128xf32>
      %35 = vector.shape_cast %31 : vector<16x128xf32> to vector<1x16x128xf32>
      tpu.vector_store %arg8[%c0_19, %c0_20, %c0_21], %35 {strides = array<i32>} : memref<2x16x128xf32, #tpu.memory_space<vmem>>, vector<1x16x128xf32>,
    } else {
    }
    %c2_i32 = arith.constant 2 : i32
    %5 = arith.remsi %arg1, %c2_i32 : i32
    %c1_i32 = arith.constant 1 : i32
    %6 = arith.subi %c1_i32, %5 : i32
    %c16_i32 = arith.constant 16 : i32
    %7 = arith.muli %arg2, %c16_i32 : i32
    %8 = tpu.assume_multiple %7, 16 : i32
    %c0 = arith.constant 0 : index
    %c0_2 = arith.constant 0 : index
    %c0_3 = arith.constant 0 : index
    %9 = vector.load %arg5[%c0, %c0_2, %c0_3] : memref<1x16x16xf32, #tpu.memory_space<vmem>>, vector<1x16x16xf32>
    %10 = vector.shape_cast %9 : vector<1x16x16xf32> to vector<16x16xf32>
    %11 = arith.index_cast %5 : i32 to index
    %c0_4 = arith.constant 0 : index
    %c0_5 = arith.constant 0 : index
    %12 = vector.load %arg8[%11, %c0_4, %c0_5] : memref<2x16x128xf32, #tpu.memory_space<vmem>>, vector<1x16x128xf32>
    %13 = vector.shape_cast %12 : vector<1x16x128xf32> to vector<16x128xf32>
    %cst = arith.constant dense<0.000000e+00> : vector<16x128xf32>
    %14 = tpu.matmul %10, %13, %cst {dimension_numbers = #tpu.dot_dimension_numbers<[1], [0], [0], [1], [0, 0, 1, 1], [], []>} : vector<16x16xf32>, vector<16x128xf32>, vector<16x128xf32> -> vector<16x128xf32>
    %15 = arith.index_cast %6 : i32 to index
    %16 = arith.index_cast %8 : i32 to index
    %c0_6 = arith.constant 0 : index
    %17 = vector.load %arg8[%15, %16, %c0_6] : memref<2x16x128xf32, #tpu.memory_space<vmem>>, vector<1x16x128xf32>
    %18 = vector.shape_cast %17 : vector<1x16x128xf32> to vector<16x128xf32>
    %19 = vector.shape_cast %14 : vector<16x128xf32> to vector<1x16x128xf32>
    tpu.vector_store %arg8[%15, %16, %c0_6], %19 {strides = array<i32>} : memref<2x16x128xf32, #tpu.memory_space<vmem>>, vector<1x16x128xf32>,
    %20 = arith.index_cast %8 : i32 to index
    %c0_7 = arith.constant 0 : index
    %21 = vector.load %arg9[%20, %c0_7] : memref<16x128xf32, #tpu.memory_space<vmem>>, vector<16x128xf32>
    %22 = arith.addf %21, %14 : vector<16x128xf32>
    %23 = arith.index_cast %8 : i32 to index
    %c0_8 = arith.constant 0 : index
    %24 = vector.load %arg9[%23, %c0_8] : memref<16x128xf32, #tpu.memory_space<vmem>>, vector<16x128xf32>
    tpu.vector_store %arg9[%23, %c0_8], %22 {strides = array<i32>} : memref<16x128xf32, #tpu.memory_space<vmem>>, vector<16x128xf32>,
    %c1_i32_9 = arith.constant 1 : i32
    %25 = arith.cmpi eq, %arg1, %c1_i32_9 : i32
    %26 = arith.extui %25 : i1 to i32
    %c0_i32_10 = arith.constant 0 : i32
    %27 = arith.cmpi ne, %26, %c0_i32_10 : i32
    scf.if %27 {
      %28 = arith.index_cast %8 : i32 to index
      %c0_11 = arith.constant 0 : index
      %29 = vector.load %arg9[%28, %c0_11] : memref<16x128xf32, #tpu.memory_space<vmem>>, vector<16x128xf32>
      %c0_12 = arith.constant 0 : index
      %c0_13 = arith.constant 0 : index
      %30 = vector.load %arg6[%c0_12, %c0_13] : memref<1x128xf32, #tpu.memory_space<vmem>>, vector<1x128xf32>
      %31 = vector.broadcast %30 : vector<1x128xf32> to vector<16x128xf32>
      %32 = arith.addf %29, %31 : vector<16x128xf32>
      %c0_14 = arith.constant 0 : index
      %33 = arith.index_cast %8 : i32 to index
      %c0_15 = arith.constant 0 : index
      %34 = vector.load %arg7[%c0_14, %33, %c0_15] : memref<1x16x128xf32, #tpu.memory_space<vmem>>, vector<1x16x128xf32>
      %35 = vector.shape_cast %34 : vector<1x16x128xf32> to vector<16x128xf32>
      %36 = vector.shape_cast %32 : vector<16x128xf32> to vector<1x16x128xf32>
      tpu.vector_store %arg7[%c0_14, %33, %c0_15], %36 {strides = array<i32>} : memref<1x16x128xf32, #tpu.memory_space<vmem>>, vector<1x16x128xf32>,
    } else {
    }
    return
  }
  func.func @transform_0(%arg0: i32, %arg1: i32, %arg2: i32) -> (i32, i32, i32) {
    %c0_i32 = arith.constant 0 : i32
    %c0_i32_0 = arith.constant 0 : i32
    %c0_i32_1 = arith.constant 0 : i32
    return %arg0, %c0_i32, %c0_i32_0 : i32, i32, i32
  }
  func.func @transform_1(%arg0: i32, %arg1: i32, %arg2: i32) -> (i32, i32) {
    %c0_i32 = arith.constant 0 : i32
    %c0_i32_0 = arith.constant 0 : i32
    %c0_i32_1 = arith.constant 0 : i32
    return %c0_i32, %c0_i32_0 : i32, i32
  }
  func.func @transform_2(%arg0: i32, %arg1: i32, %arg2: i32) -> (i32, i32, i32) {
    %c0_i32 = arith.constant 0 : i32
    %c0_i32_0 = arith.constant 0 : i32
    return %arg0, %arg2, %c0_i32 : i32, i32, i32
  }
  func.func @transform_3(%arg0: i32, %arg1: i32, %arg2: i32) -> (i32, i32) {
    %c0_i32 = arith.constant 0 : i32
    %c0_i32_0 = arith.constant 0 : i32
    %c0_i32_1 = arith.constant 0 : i32
    return %c0_i32, %c0_i32_0 : i32, i32
  }
  func.func @transform_4(%arg0: i32, %arg1: i32, %arg2: i32) -> (i32, i32, i32) {
    %c0_i32 = arith.constant 0 : i32
    %c0_i32_0 = arith.constant 0 : i32
    %c0_i32_1 = arith.constant 0 : i32
    return %arg0, %c0_i32, %c0_i32_0 : i32, i32, i32
  }
}

</mosaic_0001>

<llo_original>
// kernel: tpu_custom_call.1
$region0: #{tpu_custom_call.1}
  #allocation0 [shape = 'u32[]', space=smem, size = 0x4, offset = 0x4, fixed_abs, tag = 'smem constant byte address 0x4 - core index']
  #allocation1 [shape = 'u32[144,128]{1,0:T(1,128)}', space=vmem, size = 0x12000, scoped, tag = 'internal scratch']
  #allocation2 [shape = 'f32[2,16,128]{2,1,0:T(8,128)}', space=vmem, size = 0x4000, scoped, tag = 'scratch operand']
  #allocation3 [shape = 'f32[16,128]{1,0:T(8,128)}', space=vmem, size = 0x2000, scoped, tag = 'scratch operand']
  %s0 = inlined_call_operand.vmem [shape: f32[2,16,8], index: 0, kind: input, shape index: {}]
  %s1 = inlined_call_operand.vmem [shape: f32[8,128], index: 1, kind: input, shape index: {}]
  %s2 = inlined_call_operand.vmem [shape: f32[2,16,16], index: 2, kind: input, shape index: {}]
  %s3 = inlined_call_operand.vmem [shape: f32[1,128], index: 3, kind: input, shape index: {}]
  %s4 = inlined_call_operand.hbm [shape: f32[2,16,128], index: 4, kind: output, shape index: {}]
  %s5 = sld [smem:[#allocation0]]
  $region57: #{tpu_custom_call.1} parent=0
    _
  %s7 = ssub.s32 1, %s5
  %s8 = scalar_select 0, %s7, %s5
  $region1: #{tpu_custom_call.1} parent=0
    #allocation4 [shape = 'u8[16384]{0}', space=vmem, size = 0x4000, scoped, tag = 'output window, operand 0']
    #allocation5 [shape = 's32[2]{0}', space=sflag, size = 0x8, scoped, tag = 'scoped memory for tpu_custom_call.1']
    %9 = vsyncpa [#allocation5], 0
    %s10 = scalar_lea.sflag [#allocation5], 1
    %11 = vsyncpa %s10, 0
    loop: start=0, step=1, limit=6
    $region2: #{tpu_custom_call.1} parent=1 // loop_pre_header
      _
    $region3: #{tpu_custom_call.1} parent=1 // loop_header
      %s13 = sphi 0, %s17
      %p14 = scmp.ge.s32.totalorder %s13, 6
      %s20 = sphi 0, %s39
      %s21 = sphi 0, %s35
      %s22 = sphi 0, %s31
      %s23 = sphi 0, %s20
      %s24 = sphi 0, %s21
      %s25 = sphi 0, %s22
      %s26 = sphi 0, %s23
      %s27 = sphi 0, %s24
      %s28 = sphi 0, %s25
      %s42 = sphi 0, %s44
      %s45 = sphi 0, %s42
      %s46 = sphi 0, %s45
      %s62 = sphi 0, %s46
      %s66 = sphi 0, %s66
      %s68 = sphi 0, %s66
      %s69 = sphi 0, %s68
      %s83 = sphi 0, %s69
      %s91 = sphi 0, %s93
      %s94 = sphi 0, %s91
      %s95 = sphi 0, %s94
      %s111 = sphi 0, %s95
      %s115 = sphi 0, %s115
      %s117 = sphi 0, %s115
      %s118 = sphi 0, %s117
      %s132 = sphi 0, %s118
      %s138 = sphi 0, %s140
      %s141 = sphi 0, %s138
      %s142 = sphi 0, %s141
      %s158 = sphi 0, %s142
    $region4: #{tpu_custom_call.1} parent=1 // loop_header_branch
      %16 = sbr.rel (%p14) target = $region8
    $region5: #{tpu_custom_call.1} parent=1 // loop_body
      %s18 = ssub.s32 %s13, 1
      %s19 = ssub.s32 %s13, 2
      %s29 = sadd.s32 1, %s22
      %p30 = scmp.ge.s32.totalorder %s29, 1
      %s31 = scalar_select %p30, 0, %s29
      %s32 = sadd.s32 1, %s21
      %s33 = scalar_select %p30, %s32, %s21
      %p34 = scmp.ge.s32.totalorder %s33, 2
      %s35 = scalar_select %p34, 0, %s33
      %s36 = sadd.s32 1, %s20
      %s37 = scalar_select %p34, %s36, %s20
      %p38 = scmp.ge.s32.totalorder %s37, 2
      %s39 = scalar_select %p38, 0, %s37
      %s40 = ssub.s32 %s20, %s39
      %p41 = scmp.eq.s32.totalorder %s40, 0
      %s43 = sadd.s32 %s42, 1
      %s44 = scalar_select %p41, %s42, %s43
      %p47 = pneg %p41
      %p48 = scmp.eq.s32.totalorder %s13, 3
      %p49 = por %p47, %p48
      %p50 = scmp.ne.s32.totalorder %s42, %s45
      %p51 = scmp.eq.s32.totalorder %s13, 0
      %p52 = por %p50, %p51
      %p53 = scmp.ne.s32.totalorder %s42, %s45
      %p54 = scmp.eq.s32.totalorder %s18, 3
      %p55 = por %p53, %p54
      %p56 = scmp.ne.s32.totalorder %s45, %s46
      %p57 = scmp.eq.s32.totalorder %s18, 0
      %p58 = por %p56, %p57
      %p59 = scmp.ne.s32.totalorder %s45, %s46
      %p60 = scmp.eq.s32.totalorder %s19, 3
      %p61 = por %p59, %p60
      %p63 = scmp.ne.s32.totalorder %s46, %s62
      %p64 = scmp.eq.s32.totalorder %s19, 0
      %p65 = por %p63, %p64
      %s67 = sadd.s32 %s66, 1
      %p70 = scmp.eq.s32.totalorder %s13, 3
      %p71 = scmp.ne.s32.totalorder %s66, %s68
      %p72 = scmp.eq.s32.totalorder %s13, 0
      %p73 = por %p71, %p72
      %p74 = scmp.ne.s32.totalorder %s66, %s68
      %p75 = scmp.eq.s32.totalorder %s18, 3
      %p76 = por %p74, %p75
      %p77 = scmp.ne.s32.totalorder %s68, %s69
      %p78 = scmp.eq.s32.totalorder %s18, 0
      %p79 = por %p77, %p78
      %p80 = scmp.ne.s32.totalorder %s68, %s69
      %p81 = scmp.eq.s32.totalorder %s19, 3
      %p82 = por %p80, %p81
      %p84 = scmp.ne.s32.totalorder %s69, %s83
      %p85 = scmp.eq.s32.totalorder %s19, 0
      %p86 = por %p84, %p85
      %s87 = ssub.s32 %s20, %s39
      %s88 = ssub.s32 %s22, %s31
      %s89 = sor.u32 %s87, %s88
      %p90 = scmp.eq.s32.totalorder %s89, 0
      %s92 = sadd.s32 %s91, 1
      %s93 = scalar_select %p90, %s91, %s92
      %p96 = pneg %p90
      %p97 = scmp.eq.s32.totalorder %s13, 3
      %p98 = por %p96, %p97
      %p99 = scmp.ne.s32.totalorder %s91, %s94
      %p100 = scmp.eq.s32.totalorder %s13, 0
      %p101 = por %p99, %p100
      %p102 = scmp.ne.s32.totalorder %s91, %s94
      %p103 = scmp.eq.s32.totalorder %s18, 3
      %p104 = por %p102, %p103
      %p105 = scmp.ne.s32.totalorder %s94, %s95
      %p106 = scmp.eq.s32.totalorder %s18, 0
      %p107 = por %p105, %p106
      %p108 = scmp.ne.s32.totalorder %s94, %s95
      %p109 = scmp.eq.s32.totalorder %s19, 3
      %p110 = por %p108, %p109
      %p112 = scmp.ne.s32.totalorder %s95, %s111
      %p113 = scmp.eq.s32.totalorder %s19, 0
      %p114 = por %p112, %p113
      %s116 = sadd.s32 %s115, 1
      %p119 = scmp.eq.s32.totalorder %s13, 3
      %p120 = scmp.ne.s32.totalorder %s115, %s117
      %p121 = scmp.eq.s32.totalorder %s13, 0
      %p122 = por %p120, %p121
      %p123 = scmp.ne.s32.totalorder %s115, %s117
      %p124 = scmp.eq.s32.totalorder %s18, 3
      %p125 = por %p123, %p124
      %p126 = scmp.ne.s32.totalorder %s117, %s118
      %p127 = scmp.eq.s32.totalorder %s18, 0
      %p128 = por %p126, %p127
      %p129 = scmp.ne.s32.totalorder %s117, %s118
      %p130 = scmp.eq.s32.totalorder %s19, 3
      %p131 = por %p129, %p130
      %p133 = scmp.ne.s32.totalorder %s118, %s132
      %p134 = scmp.eq.s32.totalorder %s19, 0
      %p135 = por %p133, %p134
      %s136 = ssub.s32 %s20, %s39
      %p137 = scmp.eq.s32.totalorder %s136, 0
      %s139 = sadd.s32 %s138, 1
      %s140 = scalar_select %p137, %s138, %s139
      %p143 = pneg %p137
      %p144 = scmp.eq.s32.totalorder %s13, 3
      %p145 = por %p143, %p144
      %p146 = scmp.ne.s32.totalorder %s138, %s141
      %p147 = scmp.eq.s32.totalorder %s13, 0
      %p148 = por %p146, %p147
      %p149 = scmp.ne.s32.totalorder %s138, %s141
      %p150 = scmp.eq.s32.totalorder %s18, 3
      %p151 = por %p149, %p150
      %p152 = scmp.ne.s32.totalorder %s141, %s142
      %p153 = scmp.eq.s32.totalorder %s18, 0
      %p154 = por %p152, %p153
      %p155 = scmp.ne.s32.totalorder %s141, %s142
      %p156 = scmp.eq.s32.totalorder %s19, 3
      %p157 = por %p155, %p156
      %p159 = scmp.ne.s32.totalorder %s142, %s158
      %p160 = scmp.eq.s32.totalorder %s19, 0
      %p161 = por %p159, %p160
      %p162 = scmp.le.s32.totalorder 1, %s13
      %p163 = scmp.lt.s32.totalorder %s13, 5
      %p164 = pnand %p162, %p163
      %p165 = pneg %p164
      // Predicated region
      $region9: #{tpu_custom_call.1} parent=5 // pred_check
        _
      $region10: #{tpu_custom_call.1} parent=5 // pred_check_branch
        %167 = sbr.rel (%p164) target = $region12
      $region11: #{tpu_custom_call.1} parent=5 // pred_region
        %s168 = ssub.s32 %s13, 1
        // Predicated region
        $region13: #{tpu_custom_call.1} parent=11 // pred_check
          %p169 = pneg %p79
        $region14: #{tpu_custom_call.1} parent=11 // pred_check_branch
          %171 = sbr.rel (%p169) target = $region16
        $region15: #{tpu_custom_call.1} parent=11 // pred_region
          _
        $region16: #{tpu_custom_call.1} parent=11 // pred_fallthru
          _
        // Predicated region
        $region17: #{tpu_custom_call.1} parent=11 // pred_check
          %p172 = pneg %p128
        $region18: #{tpu_custom_call.1} parent=11 // pred_check_branch
          %174 = sbr.rel (%p172) target = $region20
        $region19: #{tpu_custom_call.1} parent=11 // pred_region
          _
        $region20: #{tpu_custom_call.1} parent=11 // pred_fallthru
          _
      $region12: #{tpu_custom_call.1} parent=5 // pred_fallthru
        _
      %p175 = scmp.lt.s32.totalorder %s13, 4
      // Predicated region
      $region21: #{tpu_custom_call.1} parent=5 // pred_check
        %p176 = pneg %p175
      $region22: #{tpu_custom_call.1} parent=5 // pred_check_branch
        %178 = sbr.rel (%p176) target = $region24
      $region23: #{tpu_custom_call.1} parent=5 // pred_region
        // Predicated region
        $region25: #{tpu_custom_call.1} parent=23 // pred_check
          %p179 = pneg %p52
        $region26: #{tpu_custom_call.1} parent=23 // pred_check_branch
          %181 = sbr.rel (%p179) target = $region28
        $region27: #{tpu_custom_call.1} parent=23 // pred_region
          %p182 = scmp.lt.s32.totalorder %s20, 1
          %s183 = scalar_select %p182, %s20, 1
          %s184 = smul.addr %s183, 2
          %s185 = smul.addr %s184, 8
          %s186 = scalar_lea.vmem %s0, %s185
        $region28: #{tpu_custom_call.1} parent=23 // pred_fallthru
          _
        // Predicated region
        $region29: #{tpu_custom_call.1} parent=23 // pred_check
          %p187 = pneg %p101
        $region30: #{tpu_custom_call.1} parent=23 // pred_check_branch
          %189 = sbr.rel (%p187) target = $region32
        $region31: #{tpu_custom_call.1} parent=23 // pred_region
          %s190 = smul.u32 2, %s22
          %p191 = scmp.lt.s32.totalorder %s20, 1
          %s192 = scalar_select %p191, %s20, 1
          %p193 = scmp.lt.s32.totalorder %s190, 1
          %s194 = scalar_select %p193, %s190, 1
          %s195 = smul.addr %s192, 2
          %s196 = sadd.s32 %s194, %s195
          %s197 = smul.addr %s196, 8
          %s198 = scalar_lea.vmem %s2, %s197
          %s199 = smul.u32 2, %s22
        $region32: #{tpu_custom_call.1} parent=23 // pred_fallthru
          _
      $region24: #{tpu_custom_call.1} parent=5 // pred_fallthru
        _
      %p200 = scmp.le.s32.totalorder 1, %s13
      %p201 = scmp.lt.s32.totalorder %s13, 5
      %p202 = pnand %p200, %p201
      %p203 = pneg %p202
      // Predicated region
      $region33: #{tpu_custom_call.1} parent=5 // pred_check
        _
      $region34: #{tpu_custom_call.1} parent=5 // pred_check_branch
        %205 = sbr.rel (%p202) target = $region36
      $region35: #{tpu_custom_call.1} parent=5 // pred_region
        %s206 = ssub.s32 %s13, 1
        %p207 = scmp.lt.s32.totalorder %s23, 1
        %s208 = scalar_select %p207, %s23, 1
        %s209 = smul.addr %s208, 2
        %s210 = smul.addr %s209, 8
        %s211 = scalar_lea.vmem %s0, %s210
        %p212 = pneg %p58
        %p213 = pneg %p55
        %p214 = pneg %p79
        %p215 = pneg %p76
        %s216 = smul.u32 2, %s25
        %p217 = scmp.lt.s32.totalorder %s23, 1
        %s218 = scalar_select %p217, %s23, 1
        %p219 = scmp.lt.s32.totalorder %s216, 1
        %s220 = scalar_select %p219, %s216, 1
        %s221 = smul.addr %s218, 2
        %s222 = sadd.s32 %s220, %s221
        %s223 = smul.addr %s222, 8
        %s224 = scalar_lea.vmem %s2, %s223
        %p225 = pneg %p107
        %p226 = pneg %p104
        %p227 = pneg %p128
        %p228 = pneg %p125
        %p229 = pneg %p154
        %p230 = pneg %p151
        %s231 = sand.u32 %s141, 1
        %s232 = scalar_lea.sflag [#allocation5], %s231
        %s233 = sand.u32 %s141, 1
        %s234 = smul.addr %s233, 16
        %s235 = scalar_lea.vmem [#allocation4], %s234
        %p236 = scmp.lt.s32.totalorder %s23, 1
        %s237 = scalar_select %p236, %s23, 1
        %s238 = smul.addr %s237, 2
        %s239 = smul.addr %s238, 8
        %s240 = scalar_lea.vmem %s0, %s239
        %s241 = smul.u32 2, %s25
        %p242 = scmp.lt.s32.totalorder %s23, 1
        %s243 = scalar_select %p242, %s23, 1
        %p244 = scmp.lt.s32.totalorder %s241, 1
        %s245 = scalar_select %p244, %s241, 1
        %s246 = smul.addr %s243, 2
        %s247 = sadd.s32 %s245, %s246
        %s248 = smul.addr %s247, 8
        %s249 = scalar_lea.vmem %s2, %s248
        %s250 = smul.u32 2, %s25
        %p251 = scmp.eq.s32.totalorder %s24, 0
        %p252 = scmp.eq.s32.totalorder %s25, 0
        %p253 = pnand %p251, %p252
        %p254 = pneg %p253
        // Predicated region
        $region37: #{tpu_custom_call.1} parent=35 // pred_check
          _
        $region38: #{tpu_custom_call.1} parent=35 // pred_check_branch
          %256 = sbr.rel (%p253) target = $region40
        $region39: #{tpu_custom_call.1} parent=35 // pred_region
          %v257 = vld [vmem:[%s240] sm:$0xff]
          %v258 = vld [vmem:[%s240 + $0x8] sm:$0xff]
          %v259 = vld [vmem:[%s1] sm:$0xff]
          %vm260 = vcmask 64512
          %v262 = vsel %vm260, %v257, 0
          %v265 = vsel %vm260, %v258, 0
          %267 = vmatprep.subr.mxu0 0.0
          %268 = vmatpush1.msra.mxu0 %v259
          %269 = vmatprep.subr.mxu0 0.0
          %270 = vmatpush1.msra.mxu0 0.0
          %271 = vmatprep.subr.mxu0 0.0
          %272 = vmatpush1.msra.mxu0 0.0
          %273 = vmatprep.subr.mxu0 0.0
          %274 = vmatpush1.msra.mxu0 0.0
          %275 = vmatprep.subr.mxu0 0.0
          %276 = vmatpush1.msra.mxu0 0.0
          %277 = vmatprep.subr.mxu0 0.0
          %278 = vmatpush1.msra.mxu0 0.0
          %279 = vmatprep.subr.mxu0 0.0
          %280 = vmatpush1.msra.mxu0 0.0
          %281 = vmatprep.subr.mxu0 0.0
          %282 = vmatpush1.msra.mxu0 0.0
          %283 = vmatprep.subr.mxu0 0.0
          %284 = vmatpush1.msra.mxu0 0.0
          %285 = vmatprep.subr.mxu0 0.0
          %286 = vmatpush1.msra.mxu0 0.0
          %287 = vmatprep.subr.mxu0 0.0
          %288 = vmatpush1.msra.mxu0 0.0
          %289 = vmatprep.subr.mxu0 0.0
          %290 = vmatpush1.msra.mxu0 0.0
          %291 = vmatprep.subr.mxu0 0.0
          %292 = vmatpush1.msra.mxu0 0.0
          %293 = vmatprep.subr.mxu0 0.0
          %294 = vmatpush1.msra.mxu0 0.0
          %295 = vmatprep.subr.mxu0 0.0
          %296 = vmatpush1.msra.mxu0 0.0
          %297 = vmatprep.subr.mxu0 0.0
          %298 = vmatpush1.msra.mxu0 0.0
          %299 = vmatprep.subr.mxu0 0.0
          %300 = vmatpush1.msra.mxu0 0.0
          %301 = vmatprep.subr.mxu0 0.0
          %302 = vmatpush1.msra.mxu0 0.0
          %303 = vmatprep.subr.mxu0 0.0
          %304 = vmatpush1.msra.mxu0 0.0
          %305 = vmatprep.subr.mxu0 0.0
          %306 = vmatpush1.msra.mxu0 0.0
          %307 = vmatprep.subr.mxu0 0.0
          %308 = vmatpush1.msra.mxu0 0.0
          %309 = vmatprep.subr.mxu0 0.0
          %310 = vmatpush1.msra.mxu0 0.0
          %311 = vmatprep.subr.mxu0 0.0
          %312 = vmatpush1.msra.mxu0 0.0
          %313 = vmatprep.subr.mxu0 0.0
          %314 = vmatpush1.msra.mxu0 0.0
          %315 = vmatprep.subr.mxu0 0.0
          %316 = vmatpush1.msra.mxu0 0.0
          %317 = vmatprep.subr.mxu0 0.0
          %318 = vmatpush1.msra.mxu0 0.0
          %319 = vmatprep.subr.mxu0 0.0
          %320 = vmatpush1.msra.mxu0 0.0
          %321 = vmatprep.subr.mxu0 0.0
          %322 = vmatpush1.msra.mxu0 0.0
          %323 = vmatprep.subr.mxu0 0.0
          %324 = vmatpush1.msra.mxu0 0.0
          %325 = vmatprep.subr.mxu0 0.0
          %326 = vmatpush1.msra.mxu0 0.0
          %327 = vmatprep.subr.mxu0 0.0
          %328 = vmatpush1.msra.mxu0 0.0
          %329 = vmatprep.subr.mxu0 0.0
          %330 = vmatpush1.msra.mxu0 0.0
          %331 = vmatprep.mubr.f32.mxu0 0.0
          %332 = vmatmul.mubr.f32.gmra.mrb[0].mxu0 %v262
          %v333 = vpop.f32.mrb[0].mxu0
          %v334 = vadd.f32 0.0, %v333
          %v335 = vpop.f32.mrb[0].mxu0
          %336 = vmatprep.mubr.f32.mxu0 0.0
          %337 = vmatmul.mubr.f32.gmra.mrb[0].mxu0 %v265
          %v338 = vpop.f32.mrb[0].mxu0
          %v339 = vadd.f32 0.0, %v338
          %v340 = vpop.f32.mrb[0].mxu0
          %341 = vdwg.mxu0
          %342 = vst [vmem:[#allocation3] sm:$0xff] %v334
          %343 = vst [vmem:[#allocation3 + $0x8] sm:$0xff] %v339
          %344 = vst [vmem:[#allocation2] sm:$0xff] %v334
          %345 = vst [vmem:[#allocation2 + $0x8] sm:$0xff] %v339
        $region40: #{tpu_custom_call.1} parent=35 // pred_fallthru
          _
        %p346 = scmp.lt.s32.totalorder %s24, 0
        %s347 = ssub.s32 0, %s24
        %s348 = scalar_select %p346, %s347, %s24
        %s349 = sand.u32 %s348, 1
        %s350 = ssub.s32 0, %s349
        %s351 = scalar_select %p346, %s350, %s349
        %s352 = ssub.s32 1, %s351
        %s353 = smul.u32 %s25, 16
        %v354 = vld [vmem:[%s249] sm:$0xff]
        %v355 = vld [vmem:[%s249 + $0x8] sm:$0xff]
        %s356 = smul.u32 %s351, 16
        %s357 = scalar_lea.vmem [#allocation2], %s356
        %v358 = vld [vmem:[%s357] sm:$0xff]
        %v359 = vld [vmem:[%s357 + $0x8] sm:$0xff]
        %vm360 = vcmask 130048
        %v362 = vsel %vm360, %v354, 0
        %v365 = vsel %vm360, %v355, 0
        %367 = vmatprep.subr.mxu0 0.0
        %368 = vmatpush1.msra.mxu0 %v358
        %369 = vmatprep.subr.mxu0 0.0
        %370 = vmatpush1.msra.mxu0 %v359
        %371 = vmatprep.subr.mxu0 0.0
        %372 = vmatpush1.msra.mxu0 0.0
        %373 = vmatprep.subr.mxu0 0.0
        %374 = vmatpush1.msra.mxu0 0.0
        %375 = vmatprep.subr.mxu0 0.0
        %376 = vmatpush1.msra.mxu0 0.0
        %377 = vmatprep.subr.mxu0 0.0
        %378 = vmatpush1.msra.mxu0 0.0
        %379 = vmatprep.subr.mxu0 0.0
        %380 = vmatpush1.msra.mxu0 0.0
        %381 = vmatprep.subr.mxu0 0.0
        %382 = vmatpush1.msra.mxu0 0.0
        %383 = vmatprep.subr.mxu0 0.0
        %384 = vmatpush1.msra.mxu0 0.0
        %385 = vmatprep.subr.mxu0 0.0
        %386 = vmatpush1.msra.mxu0 0.0
        %387 = vmatprep.subr.mxu0 0.0
        %388 = vmatpush1.msra.mxu0 0.0
        %389 = vmatprep.subr.mxu0 0.0
        %390 = vmatpush1.msra.mxu0 0.0
        %391 = vmatprep.subr.mxu0 0.0
        %392 = vmatpush1.msra.mxu0 0.0
        %393 = vmatprep.subr.mxu0 0.0
        %394 = vmatpush1.msra.mxu0 0.0
        %395 = vmatprep.subr.mxu0 0.0
        %396 = vmatpush1.msra.mxu0 0.0
        %397 = vmatprep.subr.mxu0 0.0
        %398 = vmatpush1.msra.mxu0 0.0
        %399 = vmatprep.subr.mxu0 0.0
        %400 = vmatpush1.msra.mxu0 0.0
        %401 = vmatprep.subr.mxu0 0.0
        %402 = vmatpush1.msra.mxu0 0.0
        %403 = vmatprep.subr.mxu0 0.0
        %404 = vmatpush1.msra.mxu0 0.0
        %405 = vmatprep.subr.mxu0 0.0
        %406 = vmatpush1.msra.mxu0 0.0
        %407 = vmatprep.subr.mxu0 0.0
        %408 = vmatpush1.msra.mxu0 0.0
        %409 = vmatprep.subr.mxu0 0.0
        %410 = vmatpush1.msra.mxu0 0.0
        %411 = vmatprep.subr.mxu0 0.0
        %412 = vmatpush1.msra.mxu0 0.0
        %413 = vmatprep.subr.mxu0 0.0
        %414 = vmatpush1.msra.mxu0 0.0
        %415 = vmatprep.subr.mxu0 0.0
        %416 = vmatpush1.msra.mxu0 0.0
        %417 = vmatprep.subr.mxu0 0.0
        %418 = vmatpush1.msra.mxu0 0.0
        %419 = vmatprep.subr.mxu0 0.0
        %420 = vmatpush1.msra.mxu0 0.0
        %421 = vmatprep.subr.mxu0 0.0
        %422 = vmatpush1.msra.mxu0 0.0
        %423 = vmatprep.subr.mxu0 0.0
        %424 = vmatpush1.msra.mxu0 0.0
        %425 = vmatprep.subr.mxu0 0.0
        %426 = vmatpush1.msra.mxu0 0.0
        %427 = vmatprep.subr.mxu0 0.0
        %428 = vmatpush1.msra.mxu0 0.0
        %429 = vmatprep.subr.mxu0 0.0
        %430 = vmatpush1.msra.mxu0 0.0
        %431 = vmatprep.mubr.f32.mxu0 0.0
        %432 = vmatmul.mubr.f32.gmra.mrb[0].mxu0 %v362
        %v433 = vpop.f32.mrb[0].mxu0
        %v434 = vadd.f32 0.0, %v433
        %v435 = vpop.f32.mrb[0].mxu0
        %436 = vmatprep.mubr.f32.mxu0 0.0
        %437 = vmatmul.mubr.f32.gmra.mrb[0].mxu0 %v365
        %v438 = vpop.f32.mrb[0].mxu0
        %v439 = vadd.f32 0.0, %v438
        %v440 = vpop.f32.mrb[0].mxu0
        %441 = vdwg.mxu0
        %s442 = smul.u32 %s352, 16
        %s443 = sadd.s32 %s353, %s442
        %s444 = scalar_lea.vmem [#allocation2], %s443
        %445 = vst [vmem:[%s444] sm:$0xff] %v434
        %446 = vst [vmem:[%s444 + $0x8] sm:$0xff] %v439
        %s447 = scalar_lea.vmem [#allocation3], %s353
        %v448 = vld [vmem:[%s447] sm:$0xff]
        %v449 = vld [vmem:[%s447 + $0x8] sm:$0xff]
        %v450 = vadd.f32 %v448, %v434
        %v451 = vadd.f32 %v449, %v439
        %452 = vst [vmem:[%s447] sm:$0xff] %v450
        %453 = vst [vmem:[%s447 + $0x8] sm:$0xff] %v451
        %p454 = scmp.eq.s32.totalorder %s24, 1
        // Predicated region
        $region41: #{tpu_custom_call.1} parent=35 // pred_check
          %p455 = pneg %p454
        $region42: #{tpu_custom_call.1} parent=35 // pred_check_branch
          %457 = sbr.rel (%p455) target = $region44
        $region43: #{tpu_custom_call.1} parent=35 // pred_region
          %v458 = vld [vmem:[%s447] sm:$0xff]
          %v459 = vld [vmem:[%s447 + $0x8] sm:$0xff]
          %v460 = vld [vmem:[%s3] sm:$0x1]
          %v462 = vlaneseq
          %v463 = vshrl.u32 %v462, 7
          %v464 = vsub.s32 0, %v463
          %v465 = vrot.slane %v460, %v464
          %v467 = vadd.f32 %v458, %v465
          %v468 = vadd.f32 %v459, %v465
          %s469 = scalar_lea.vmem %s235, %s353 [#allocation4]
          %470 = vst [vmem:[%s469] sm:$0xff] %v467
          %471 = vst [vmem:[%s469 + $0x8] sm:$0xff] %v468
        $region44: #{tpu_custom_call.1} parent=35 // pred_fallthru
          _
        %s472 = sand.u32 %s141, 1
        %s473 = scalar_lea.sflag [#allocation5], %s472
        %s474 = sand.u32 %s141, 1
        %s475 = smul.addr %s474, 16
        %s476 = scalar_lea.vmem [#allocation4], %s475
        // Predicated region
        $region45: #{tpu_custom_call.1} parent=35 // pred_check
          %p477 = pneg %p151
        $region46: #{tpu_custom_call.1} parent=35 // pred_check_branch
          %479 = sbr.rel (%p477) target = $region48
        $region47: #{tpu_custom_call.1} parent=35 // pred_region
          %s481 = ssub.s32 256, 256
          %482 = vsyncadd %s473, %s481
          %s483 = smul.addr %s23, 2
          %s484 = smul.addr %s483, 128
          %s485 = scalar_lea.hbm %s4, %s484
          %s486 = sshll.u32 %s476, 4
          %s487 = int_to_ptr.vmem [resolvable:$true] %s486
          %492 = dma.vmem_to_hbm [thread:$0]  %s487, 256, %s485, %s473, 128, 128, 8
        $region48: #{tpu_custom_call.1} parent=35 // pred_fallthru
          _
      $region36: #{tpu_custom_call.1} parent=5 // pred_fallthru
        _
      %p493 = scmp.le.s32.totalorder 2, %s13
      // Predicated region
      $region49: #{tpu_custom_call.1} parent=5 // pred_check
        %p494 = pneg %p493
      $region50: #{tpu_custom_call.1} parent=5 // pred_check_branch
        %496 = sbr.rel (%p494) target = $region52
      $region51: #{tpu_custom_call.1} parent=5 // pred_region
        %s497 = ssub.s32 %s13, 2
        // Predicated region
        $region53: #{tpu_custom_call.1} parent=51 // pred_check
          %p498 = pneg %p157
        $region54: #{tpu_custom_call.1} parent=51 // pred_check_branch
          %500 = sbr.rel (%p498) target = $region56
        $region55: #{tpu_custom_call.1} parent=51 // pred_region
          %s501 = sand.u32 %s142, 1
          %s502 = scalar_lea.sflag [#allocation5], %s501
          %s503 = sand.u32 %s142, 1
          %s504 = smul.addr %s503, 16
          %s505 = scalar_lea.vmem [#allocation4], %s504
          %506 = dma.done %s502, 256
        $region56: #{tpu_custom_call.1} parent=51 // pred_fallthru
          _
      $region52: #{tpu_custom_call.1} parent=5 // pred_fallthru
        _
    $region6: #{tpu_custom_call.1} parent=1 // loop_footer
      %s17 = sadd.s32 1, %s13
    $region7: #{tpu_custom_call.1} parent=1 // loop_footer_branch
      %12 = sbr.rel target = $region3
    $region8: #{tpu_custom_call.1} parent=1 // loop_exit
      _
    %507 = vsyncpa [#allocation5], 1
    %s508 = scalar_lea.sflag [#allocation5], 1
    %509 = vsyncpa %s508, 1

</llo_original>
